<compile_context>
chip_gen: v5e
topology: v5e:2x2
jax: 0.10.0
libtpu: 0.0.40
codegen_flags: <defaults>
</compile_context>

<pallas_src>
import functools

import numpy as np
import jax
import jax.numpy as jnp
from jax.experimental import pallas as pl
from jax.experimental.pallas import tpu as pltpu


def gap_kernel(x_ref, o_ref, acc_ref, *, inv_area):
    # x_ref:   (row_tile, s_tile)  rows of the flattened (N*C, S) view
    # o_ref:   (row_tile, 1)       per-row spatial mean, input dtype
    # acc_ref: (row_tile, 1)       fp32 accumulator, resident across the k axis
    k = pl.program_id(1)

    @pl.when(k == 0)
    def _init():
        acc_ref[...] = jnp.zeros_like(acc_ref)

    # Widen in the reduction (no separate full-tile f32 copy); lane-axis reduce.
    acc_ref[...] += jnp.sum(x_ref[...], axis=1, keepdims=True, dtype=jnp.float32)

    @pl.when(k == pl.num_programs(1) - 1)
    def _finalize():
        o_ref[...] = (acc_ref[...] * inv_area).astype(o_ref.dtype)


def _sublane(dtype):
    # minimum sublane tiling per dtype (f32: 8, bf16: 16, int8/fp8: 32)
    return {4: 8, 2: 16, 1: 32}.get(jnp.dtype(dtype).itemsize, 8)


def _pick_row_tile(nc, sub, max_rows=512):
    """Largest multiple of `sub` that divides nc, capped at max_rows.

    Falls back to the full nc (block dim == full array dim is always legal)."""
    best = None
    t = sub
    while t <= min(nc, max_rows):
        if nc % t == 0:
            best = t
        t += sub
    return best if best is not None else nc


def _pick_s_tile(s, row_tile, itemsize, max_block_bytes):
    """Largest multiple of 128 dividing s with row_tile*s_tile*itemsize <= budget."""
    max_cols = max_block_bytes // max(1, row_tile * itemsize)
    best = None
    t = 128
    while t <= min(s, max_cols):
        if s % t == 0:
            best = t
        t += 128
    # Fallback: whole spatial extent as a single block (block dim == full array
    # dim is always legal; single k-step).
    # TODO(synk): mask a remainder step instead, for S with no 128-multiple
    # divisor where a full-S block would not fit VMEM.
    return best if best is not None else s


def global_average_pooling(feat, *, max_block_bytes=4 * 1024 * 1024):
    """feat: (N, C, H, W) array -> (N, C) spatial means, same dtype as feat."""
    N, C, H, W = feat.shape
    S = H * W
    NC = N * C

    # Free view: H, W are the contiguous minor dims of NCHW, so this is a pure
    # reshape (no transpose, no pad -> no extra HBM passes).
    x = feat.reshape(NC, S)

    itemsize = jnp.dtype(feat.dtype).itemsize
    sub = _sublane(feat.dtype)
    row_tile = _pick_row_tile(NC, sub)
    s_tile = _pick_s_tile(S, row_tile, itemsize, max_block_bytes)

    # If we fell back to the full spatial extent and the block blew the budget,
    # shrink the row tile instead (keeps double-buffered VMEM bounded).
    if s_tile == S and row_tile * S * itemsize > max_block_bytes:
        cap_rows = max(sub, max_block_bytes // max(1, S * itemsize))
        row_tile = _pick_row_tile(NC, sub, max_rows=cap_rows)

    grid = (NC // row_tile, S // s_tile)  # exact by construction

    out2d = pl.pallas_call(
        functools.partial(gap_kernel, inv_area=1.0 / float(S)),
        out_shape=jax.ShapeDtypeStruct((NC, 1), feat.dtype),
        grid_spec=pltpu.PrefetchScalarGridSpec(
            num_scalar_prefetch=0,
            grid=grid,
            in_specs=[pl.BlockSpec((row_tile, s_tile), lambda r, k: (r, k))],
            out_specs=pl.BlockSpec((row_tile, 1), lambda r, k: (r, 0)),
            scratch_shapes=[pltpu.VMEM((row_tile, 1), jnp.float32)],
        ),
        compiler_params=pltpu.CompilerParams(
            dimension_semantics=("parallel", "arbitrary")),
    )(x)
    return out2d.reshape(N, C)


if __name__ == "__main__":
    key = jax.random.PRNGKey(0)
    N, C, H, W = 2, 4, 16, 16
    feat = jax.random.normal(key, (N, C, H, W), dtype=jnp.float32)
    ref = jnp.mean(feat, axis=(2, 3))

    # 1) default tiling (spatial axis fits in one block)
    out = jax.block_until_ready(jax.jit(global_average_pooling)(feat))
    assert out.shape == (N, C) and out.dtype == feat.dtype
    np.testing.assert_allclose(np.asarray(out), np.asarray(ref), rtol=1e-5, atol=1e-5)

    # 2) force the multi-step spatial-accumulator path (s_tile=128 -> 2 k-steps)
    gap_tiled = jax.jit(functools.partial(global_average_pooling,
                                          max_block_bytes=8 * 128 * 4))
    out2 = jax.block_until_ready(gap_tiled(feat))
    np.testing.assert_allclose(np.asarray(out2), np.asarray(ref), rtol=1e-5, atol=1e-5)

    # 3) bf16 in -> bf16 out (fp32 accumulation happens inside the kernel)
    feat_bf16 = feat.astype(jnp.bfloat16)
    out3 = jax.block_until_ready(jax.jit(global_average_pooling)(feat_bf16))
    assert out3.dtype == jnp.bfloat16
    ref_bf16 = jnp.mean(feat_bf16.astype(jnp.float32), axis=(2, 3))
    np.testing.assert_allclose(np.asarray(out3, dtype=np.float32),
                               np.asarray(ref_bf16), rtol=2e-2, atol=2e-3)

    print("KERNEL_OK")
</pallas_src>

<mosaic_0001>
module attributes {stable_mosaic.version = 11 : i64} {
  func.func @gap_kernel(%arg0: i32, %arg1: i32, %arg2: memref<8x256xf32, #tpu.memory_space<vmem>>, %arg3: memref<8x1xf32, #tpu.memory_space<vmem>>, %arg4: memref<8x1xf32, #tpu.memory_space<vmem>>) attributes {dimension_semantics = [#tpu.dimension_semantics<parallel>, #tpu.dimension_semantics<arbitrary>], iteration_bounds = array<i64: 1, 1>, scalar_prefetch = 0 : i64, scratch_operands = 1 : i64, tpu.core_type = #tpu.core_type<tc>, window_params = [{transform_indices = @transform_0, window_bounds = array<i64: 8, 256>}, {transform_indices = @transform_1, window_bounds = array<i64: 8, 1>}]} {
    %c0_i32 = arith.constant 0 : i32
    %0 = arith.cmpi eq, %arg1, %c0_i32 : i32
    %1 = arith.extui %0 : i1 to i32
    %c0_i32_0 = arith.constant 0 : i32
    %2 = arith.cmpi ne, %1, %c0_i32_0 : i32
    scf.if %2 {
      %cst_8 = arith.constant 0.000000e+00 : f32
      %12 = vector.broadcast %cst_8 : f32 to vector<8x1xf32>
      %c0_9 = arith.constant 0 : index
      %c0_10 = arith.constant 0 : index
      %13 = vector.load %arg4[%c0_9, %c0_10] : memref<8x1xf32, #tpu.memory_space<vmem>>, vector<8x1xf32>
      tpu.vector_store %arg4[%c0_9, %c0_10], %12 {strides = array<i32>} : memref<8x1xf32, #tpu.memory_space<vmem>>, vector<8x1xf32>,
    } else {
    }
    %c0 = arith.constant 0 : index
    %c0_1 = arith.constant 0 : index
    %3 = vector.load %arg4[%c0, %c0_1] : memref<8x1xf32, #tpu.memory_space<vmem>>, vector<8x1xf32>
    %c0_2 = arith.constant 0 : index
    %c0_3 = arith.constant 0 : index
    %4 = vector.load %arg2[%c0_2, %c0_3] : memref<8x256xf32, #tpu.memory_space<vmem>>, vector<8x256xf32>
    %cst = arith.constant dense<0.000000e+00> : vector<8xf32>
    %5 = vector.multi_reduction <add>, %4, %cst [1] : vector<8x256xf32> to vector<8xf32>
    %6 = vector.shape_cast %5 : vector<8xf32> to vector<8x1xf32>
    %7 = arith.addf %3, %6 : vector<8x1xf32>
    %c0_4 = arith.constant 0 : index
    %c0_5 = arith.constant 0 : index
    %8 = vector.load %arg4[%c0_4, %c0_5] : memref<8x1xf32, #tpu.memory_space<vmem>>, vector<8x1xf32>
    tpu.vector_store %arg4[%c0_4, %c0_5], %7 {strides = array<i32>} : memref<8x1xf32, #tpu.memory_space<vmem>>, vector<8x1xf32>,
    %c0_i32_6 = arith.constant 0 : i32
    %9 = arith.cmpi eq, %arg1, %c0_i32_6 : i32
    %10 = arith.extui %9 : i1 to i32
    %c0_i32_7 = arith.constant 0 : i32
    %11 = arith.cmpi ne, %10, %c0_i32_7 : i32
    scf.if %11 {
      %c0_8 = arith.constant 0 : index
      %c0_9 = arith.constant 0 : index
      %12 = vector.load %arg4[%c0_8, %c0_9] : memref<8x1xf32, #tpu.memory_space<vmem>>, vector<8x1xf32>
      %cst_10 = arith.constant 3.906250e-03 : f32
      %13 = vector.broadcast %cst_10 : f32 to vector<8x1xf32>
      %14 = arith.mulf %12, %13 : vector<8x1xf32>
      %c0_11 = arith.constant 0 : index
      %c0_12 = arith.constant 0 : index
      %15 = vector.load %arg3[%c0_11, %c0_12] : memref<8x1xf32, #tpu.memory_space<vmem>>, vector<8x1xf32>
      tpu.vector_store %arg3[%c0_11, %c0_12], %14 {strides = array<i32>} : memref<8x1xf32, #tpu.memory_space<vmem>>, vector<8x1xf32>,
    } else {
    }
    return
  }
  func.func @transform_0(%arg0: i32, %arg1: i32) -> (i32, i32) {
    %c0_i32 = arith.constant 0 : i32
    return %arg0, %arg1 : i32, i32
  }
  func.func @transform_1(%arg0: i32, %arg1: i32) -> (i32, i32) {
    %c0_i32 = arith.constant 0 : i32
    %c0_i32_0 = arith.constant 0 : i32
    return %arg0, %c0_i32 : i32, i32
  }
}

</mosaic_0001>

<llo_original>
// kernel: global_average_pooling.1
$region0: #{global_average_pooling.1}
  #allocation0 [shape = 'u32[]', space=smem, size = 0x4, offset = 0x4, fixed_abs, tag = 'smem constant byte address 0x4 - core index']
  #allocation1 [shape = 'u32[72,128]{1,0:T(1,128)}', space=vmem, size = 0x9000, scoped, tag = 'internal scratch']
  #allocation2 [shape = 'f32[8,1]{1,0:T(8,128)}', space=vmem, size = 0x1000, scoped, tag = 'scratch operand']
  %s0 = inlined_call_operand.vmem [shape: f32[8,256], index: 0, kind: input, shape index: {}]
  %s1 = inlined_call_operand.vmem [shape: f32[8,1], index: 1, kind: output, shape index: {}]
  %s2 = sld [smem:[#allocation0]]
  $region22: #{global_average_pooling.1} parent=0
    _
  %s4 = ssub.s32 1, %s2
  %s5 = scalar_select 0, %s4, %s2
  // Predicated region
  $region2: #{global_average_pooling.1} parent=0 // pred_check
    _
  $region3: #{global_average_pooling.1} parent=0 // pred_check_branch
    %7 = sbr.rel (0) target = $region5
  $region4: #{global_average_pooling.1} parent=0 // pred_region
    _
  $region5: #{global_average_pooling.1} parent=0 // pred_fallthru
    _
  %p8 = scmp.eq.s32.totalorder 0, 0
  // Predicated region
  $region6: #{global_average_pooling.1} parent=0 // pred_check
    %p9 = pneg %p8
  $region7: #{global_average_pooling.1} parent=0 // pred_check_branch
    %11 = sbr.rel (%p9) target = $region9
  $region8: #{global_average_pooling.1} parent=0 // pred_region
    %vm12 = vcmask 7168
    %13 = vst.msk [vmem:[#allocation2] sm:$0xff] %vm12, 0.0
  $region9: #{global_average_pooling.1} parent=0 // pred_fallthru
    _
  %v14 = vld [vmem:[#allocation2] sm:$0xff]
  %v15 = vld [vmem:[%s0] sm:$0xff]
  %v16 = vld [vmem:[%s0 + $0x8] sm:$0xff]
  %v17 = vadd.f32 %v15, %v16
  %18 = vadd.xlane.f32.xlu0 %v17
  %v19 = vpop.xlane.xlu0 %18
  %v20 = vadd.f32 %v14, %v19
  %vm21 = vcmask 7168
  %22 = vst.msk [vmem:[#allocation2] sm:$0xff] %vm21, %v20
  // Predicated region
  $region10: #{global_average_pooling.1} parent=0 // pred_check
    %p23 = pneg %p8
  $region11: #{global_average_pooling.1} parent=0 // pred_check_branch
    %25 = sbr.rel (%p23) target = $region13
  $region12: #{global_average_pooling.1} parent=0 // pred_region
    %v26 = vld [vmem:[#allocation2] sm:$0xff]
    %v27 = vmul.f32 %v26, 0.00390625
    %28 = vst.msk [vmem:[%s1] sm:$0xff] %vm21, %v27
  $region13: #{global_average_pooling.1} parent=0 // pred_fallthru
    _
  // Predicated region
  $region14: #{global_average_pooling.1} parent=0 // pred_check
    _
  $region15: #{global_average_pooling.1} parent=0 // pred_check_branch
    %30 = sbr.rel (0) target = $region17
  $region16: #{global_average_pooling.1} parent=0 // pred_region
    _
  $region17: #{global_average_pooling.1} parent=0 // pred_fallthru
    _
  // Predicated region
  $region18: #{global_average_pooling.1} parent=0 // pred_check
    _
  $region19: #{global_average_pooling.1} parent=0 // pred_check_branch
    %32 = sbr.rel (0) target = $region21
  $region20: #{global_average_pooling.1} parent=0 // pred_region
    _
  $region21: #{global_average_pooling.1} parent=0 // pred_fallthru
    _

</llo_original>
